<compile_context>
chip_gen: v5e
topology: v5e:2x2
jax: 0.10.0
libtpu: 0.0.40
codegen_flags: <defaults>
</compile_context>

<pallas_src>
import jax
import jax.numpy as jnp
from jax import lax
from jax.experimental import pallas as pl
from jax.experimental.pallas import tpu as pltpu


def learnable_pcl_loss(f_emb, label, tau, num_labels):
    """f_emb: [B, D] (any float dtype), label: [B] int, tau: [1] float32 (learnable)."""
    B, D = f_emb.shape
    L = int(num_labels)
    L_pad = ((L + 127) // 128) * 128          # lane-aligned class dimension

    def kernel(f_ref, lab_row_ref, lab_col_ref, tau_ref, out_ref):
        f = f_ref[...].astype(jnp.float32)                       # [B, D]
        lab_row = lab_row_ref[...]                               # [1, B] int32
        lab_col = lab_col_ref[...]                               # [B, 1] int32

        # 1. prototype aggregation: build the one-hot already transposed ([L_pad, B])
        #    with a VPU compare so the MXU contraction is [M,K]x[K,N].
        iota_l = lax.broadcasted_iota(jnp.int32, (L_pad, B), 0)
        onehot_t = (iota_l == lab_row).astype(jnp.float32)       # [L_pad, B]
        proto_sum = lax.dot_general(
            onehot_t, f, (((1,), (0,)), ((), ())),
            preferred_element_type=jnp.float32)                  # [L_pad, D]

        # 2. L2 normalize (F.normalize eps=1e-6 -> clamp sumsq at 1e-12) + scaled logits.
        #    The mean divide and empty-row zeroing cancel here: proto_sum==0 rows stay 0.
        eps_sq = 1e-12
        f_n = f * lax.rsqrt(jnp.maximum(
            jnp.sum(f * f, axis=1, keepdims=True), eps_sq))      # [B, D]
        p_n = proto_sum * lax.rsqrt(jnp.maximum(
            jnp.sum(proto_sum * proto_sum, axis=1, keepdims=True), eps_sq))  # [L_pad, D]

        scale = jnp.exp(tau_ref[0, 0] * jnp.ones((1, 1), jnp.float32))       # [1, 1]
        logits = lax.dot_general(
            f_n, p_n, (((1,), (1,)), ((), ())),
            preferred_element_type=jnp.float32) * scale          # [B, L_pad]

        col = lax.broadcasted_iota(jnp.int32, (B, L_pad), 1)
        if L_pad != L:
            # padded (non-existent) classes must not contribute to the softmax
            logits = jnp.where(col < L, logits, -1e30)

        # 3. cross entropy with ignore_index = -1 (mean over valid rows)
        onehot = (col == lab_col).astype(jnp.float32)            # [B, L_pad]
        valid = (lab_col >= 0).astype(jnp.float32)               # [B, 1]
        m = jnp.max(logits, axis=1, keepdims=True)               # [B, 1]
        lse = jnp.log(jnp.sum(jnp.exp(logits - m), axis=1, keepdims=True)) + m
        tgt = jnp.sum(logits * onehot, axis=1, keepdims=True)    # gather label logit
        per_row = (lse - tgt) * valid                            # [B, 1]
        # NOTE: all-ignored batch returns 0 here (torch CE 'mean' would give NaN).
        denom = jnp.maximum(jnp.sum(valid, axis=0, keepdims=True), 1.0)      # [1, 1]
        out_ref[...] = jnp.sum(per_row, axis=0, keepdims=True) / denom

    out = pl.pallas_call(
        kernel,
        out_shape=jax.ShapeDtypeStruct((1, 1), jnp.float32),
        in_specs=[
            pl.BlockSpec(memory_space=pltpu.MemorySpace.VMEM),   # f_emb (native dtype)
            pl.BlockSpec(memory_space=pltpu.MemorySpace.VMEM),   # label [1, B]
            pl.BlockSpec(memory_space=pltpu.MemorySpace.VMEM),   # label [B, 1]
            pl.BlockSpec(memory_space=pltpu.MemorySpace.SMEM),   # tau scalar
        ],
        out_specs=pl.BlockSpec(memory_space=pltpu.MemorySpace.VMEM),
    )(
        f_emb,                                   # no wrapper-side upcast (halves DMA for bf16)
        label.reshape(1, B).astype(jnp.int32),
        label.reshape(B, 1).astype(jnp.int32),
        tau.reshape(1, 1).astype(jnp.float32),
    )
    return out[0, 0]


def _ref_pcl_loss(f_emb, label, tau, num_labels):
    """Pure-JAX reference mirroring the torch module exactly."""
    f = f_emb.astype(jnp.float32)
    B = f.shape[0]
    onehot = (label[:, None] == jnp.arange(num_labels)[None, :]).astype(jnp.float32)
    proto_sum = jnp.einsum("bl,bd->ld", onehot, f,
                           precision=jax.lax.Precision.HIGHEST)
    proto_cum = jnp.sum(onehot, axis=0)[:, None]
    proto = proto_sum / (proto_cum + 1e-6)
    proto = jnp.where(proto_cum < 0.5, 0.0, proto)
    f_n = f / jnp.maximum(jnp.linalg.norm(f, axis=1, keepdims=True), 1e-6)
    p_n = proto / jnp.maximum(jnp.linalg.norm(proto, axis=1, keepdims=True), 1e-6)
    logits = jnp.einsum("bd,ld->bl", f_n, p_n,
                        precision=jax.lax.Precision.HIGHEST) * jnp.exp(tau[0])
    valid = label >= 0
    lse = jax.nn.logsumexp(logits, axis=1)
    tgt = logits[jnp.arange(B), jnp.clip(label, 0, num_labels - 1)]
    per = jnp.where(valid, lse - tgt, 0.0)
    return jnp.sum(per) / jnp.maximum(jnp.sum(valid.astype(jnp.float32)), 1.0)


if __name__ == "__main__":
    # small shapes implied by the module: f_emb [B, d_f], label [B], num_labels classes
    B, D, NUM_LABELS = 8, 32, 110
    key = jax.random.PRNGKey(0)
    kf, kl = jax.random.split(key)
    f_emb = jax.random.normal(kf, (B, D), dtype=jnp.float32)
    label = jax.random.randint(kl, (B,), 0, NUM_LABELS, dtype=jnp.int32)

    # deterministic parameter init (matches module __init__): tau = log(1 / init_tau)
    init_tau = 0.07
    tau = jnp.log(jnp.array([1.0 / init_tau], dtype=jnp.float32))

    loss = learnable_pcl_loss(f_emb, label, tau, num_labels=NUM_LABELS)
    jax.block_until_ready(loss)
    assert loss.shape == () and jnp.isfinite(loss)

    ref = _ref_pcl_loss(f_emb, label, tau, NUM_LABELS)
    assert jnp.allclose(loss, ref, rtol=2e-3, atol=2e-3), (loss, ref)
    print("KERNEL_OK")
</pallas_src>

<mosaic_0001>
module attributes {stable_mosaic.version = 11 : i64} {
  func.func @kernel(%arg0: memref<8x32xf32, #tpu.memory_space<vmem>>, %arg1: memref<1x8xi32, #tpu.memory_space<vmem>>, %arg2: memref<8x1xi32, #tpu.memory_space<vmem>>, %arg3: memref<1x1xf32, #tpu.memory_space<smem>>, %arg4: memref<1x1xf32, #tpu.memory_space<vmem>>) attributes {dimension_semantics = [], scalar_prefetch = 0 : i64, scratch_operands = 0 : i64, tpu.core_type = #tpu.core_type<tc>} {
    %c0 = arith.constant 0 : index
    %c0_0 = arith.constant 0 : index
    %0 = vector.load %arg0[%c0, %c0_0] : memref<8x32xf32, #tpu.memory_space<vmem>>, vector<8x32xf32>
    %c0_1 = arith.constant 0 : index
    %c0_2 = arith.constant 0 : index
    %1 = vector.load %arg1[%c0_1, %c0_2] : memref<1x8xi32, #tpu.memory_space<vmem>>, vector<1x8xi32>
    %c0_3 = arith.constant 0 : index
    %c0_4 = arith.constant 0 : index
    %2 = vector.load %arg2[%c0_3, %c0_4] : memref<8x1xi32, #tpu.memory_space<vmem>>, vector<8x1xi32>
    %3 = tpu.iota {dimensions = array<i32: 0>} : vector<128x8xi32>
    %4 = vector.broadcast %1 : vector<1x8xi32> to vector<128x8xi32>
    %5 = arith.cmpi eq, %3, %4 : vector<128x8xi32>
    %6 = arith.extui %5 : vector<128x8xi1> to vector<128x8xi32>
    %7 = arith.sitofp %6 : vector<128x8xi32> to vector<128x8xf32>
    %cst = arith.constant dense<0.000000e+00> : vector<128x32xf32>
    %8 = tpu.matmul %7, %0, %cst {dimension_numbers = #tpu.dot_dimension_numbers<[1], [0], [0], [1], [0, 0, 1, 1], [], []>} : vector<128x8xf32>, vector<8x32xf32>, vector<128x32xf32> -> vector<128x32xf32>
    %9 = arith.mulf %0, %0 : vector<8x32xf32>
    %cst_5 = arith.constant dense<0.000000e+00> : vector<8xf32>
    %10 = vector.multi_reduction <add>, %9, %cst_5 [1] : vector<8x32xf32> to vector<8xf32>
    %11 = vector.shape_cast %10 : vector<8xf32> to vector<8x1xf32>
    %cst_6 = arith.constant 9.99999996E-13 : f32
    %12 = vector.broadcast %cst_6 : f32 to vector<8x1xf32>
    %13 = arith.maximumf %11, %12 : vector<8x1xf32>
    %14 = math.rsqrt %13 : vector<8x1xf32>
    %15 = vector.broadcast %14 : vector<8x1xf32> to vector<8x32xf32>
    %16 = arith.mulf %0, %15 : vector<8x32xf32>
    %17 = arith.mulf %8, %8 : vector<128x32xf32>
    %cst_7 = arith.constant dense<0.000000e+00> : vector<128xf32>
    %18 = vector.multi_reduction <add>, %17, %cst_7 [1] : vector<128x32xf32> to vector<128xf32>
    %19 = vector.shape_cast %18 : vector<128xf32> to vector<128x1xf32>
    %cst_8 = arith.constant 9.99999996E-13 : f32
    %20 = vector.broadcast %cst_8 : f32 to vector<128x1xf32>
    %21 = arith.maximumf %19, %20 : vector<128x1xf32>
    %22 = math.rsqrt %21 : vector<128x1xf32>
    %23 = vector.broadcast %22 : vector<128x1xf32> to vector<128x32xf32>
    %24 = arith.mulf %8, %23 : vector<128x32xf32>
    %c0_9 = arith.constant 0 : index
    %c0_10 = arith.constant 0 : index
    %25 = memref.load %arg3[%c0_9, %c0_10] : memref<1x1xf32, #tpu.memory_space<smem>>
    %cst_11 = arith.constant 1.000000e+00 : f32
    %26 = vector.broadcast %cst_11 : f32 to vector<1x1xf32>
    %27 = vector.broadcast %25 : f32 to vector<1x1xf32>
    %28 = arith.mulf %27, %26 : vector<1x1xf32>
    %29 = math.exp %28 : vector<1x1xf32>
    %cst_12 = arith.constant dense<0.000000e+00> : vector<8x128xf32>
    %30 = tpu.matmul %16, %24, %cst_12 {dimension_numbers = #tpu.dot_dimension_numbers<[1], [1], [0], [0], [0, 0, 1, 0], [], []>} : vector<8x32xf32>, vector<128x32xf32>, vector<8x128xf32> -> vector<8x128xf32>
    %31 = vector.broadcast %29 : vector<1x1xf32> to vector<8x128xf32>
    %32 = arith.mulf %30, %31 : vector<8x128xf32>
    %33 = tpu.iota {dimensions = array<i32: 1>} : vector<8x128xi32>
    %c110_i32 = arith.constant 110 : i32
    %34 = vector.broadcast %c110_i32 : i32 to vector<8x128xi32>
    %35 = arith.cmpi slt, %33, %34 : vector<8x128xi32>
    %cst_13 = arith.constant -1.000000e+30 : f32
    %36 = vector.broadcast %cst_13 : f32 to vector<8x128xf32>
    %37 = arith.select %35, %32, %36 : vector<8x128xi1>, vector<8x128xf32>
    %38 = vector.broadcast %2 : vector<8x1xi32> to vector<8x128xi32>
    %39 = arith.cmpi eq, %33, %38 : vector<8x128xi32>
    %40 = arith.extui %39 : vector<8x128xi1> to vector<8x128xi32>
    %41 = arith.sitofp %40 : vector<8x128xi32> to vector<8x128xf32>
    %c0_i32 = arith.constant 0 : i32
    %42 = vector.broadcast %c0_i32 : i32 to vector<8x1xi32>
    %43 = arith.cmpi sge, %2, %42 : vector<8x1xi32>
    %44 = arith.extui %43 : vector<8x1xi1> to vector<8x1xi32>
    %45 = arith.sitofp %44 : vector<8x1xi32> to vector<8x1xf32>
    %cst_14 = arith.constant dense<0xFF800000> : vector<8xf32>
    %46 = vector.multi_reduction <maximumf>, %37, %cst_14 [1] : vector<8x128xf32> to vector<8xf32>
    %47 = vector.shape_cast %46 : vector<8xf32> to vector<8x1xf32>
    %48 = vector.broadcast %47 : vector<8x1xf32> to vector<8x128xf32>
    %49 = arith.subf %37, %48 : vector<8x128xf32>
    %50 = math.exp %49 : vector<8x128xf32>
    %cst_15 = arith.constant dense<0.000000e+00> : vector<8xf32>
    %51 = vector.multi_reduction <add>, %50, %cst_15 [1] : vector<8x128xf32> to vector<8xf32>
    %52 = vector.shape_cast %51 : vector<8xf32> to vector<8x1xf32>
    %53 = math.log %52 : vector<8x1xf32>
    %54 = arith.addf %53, %47 : vector<8x1xf32>
    %55 = arith.mulf %37, %41 : vector<8x128xf32>
    %cst_16 = arith.constant dense<0.000000e+00> : vector<8xf32>
    %56 = vector.multi_reduction <add>, %55, %cst_16 [1] : vector<8x128xf32> to vector<8xf32>
    %57 = vector.shape_cast %56 : vector<8xf32> to vector<8x1xf32>
    %58 = arith.subf %54, %57 : vector<8x1xf32>
    %59 = arith.mulf %58, %45 : vector<8x1xf32>
    %cst_17 = arith.constant dense<0.000000e+00> : vector<1xf32>
    %60 = vector.multi_reduction <add>, %45, %cst_17 [0] : vector<8x1xf32> to vector<1xf32>
    %61 = vector.shape_cast %60 : vector<1xf32> to vector<1x1xf32>
    %cst_18 = arith.constant 1.000000e+00 : f32
    %62 = vector.broadcast %cst_18 : f32 to vector<1x1xf32>
    %63 = arith.maximumf %61, %62 : vector<1x1xf32>
    %cst_19 = arith.constant dense<0.000000e+00> : vector<1xf32>
    %64 = vector.multi_reduction <add>, %59, %cst_19 [0] : vector<8x1xf32> to vector<1xf32>
    %65 = vector.shape_cast %64 : vector<1xf32> to vector<1x1xf32>
    %66 = arith.divf %65, %63 : vector<1x1xf32>
    %c0_20 = arith.constant 0 : index
    %c0_21 = arith.constant 0 : index
    %67 = vector.load %arg4[%c0_20, %c0_21] : memref<1x1xf32, #tpu.memory_space<vmem>>, vector<1x1xf32>
    tpu.vector_store %arg4[%c0_20, %c0_21], %66 {strides = array<i32>} : memref<1x1xf32, #tpu.memory_space<vmem>>, vector<1x1xf32>,
    return
  }
}

</mosaic_0001>

<llo_original>
// kernel: tpu_custom_call.1
$region0: #{tpu_custom_call.1}
  #allocation0 [shape = 'u32[]', space=smem, size = 0x4, offset = 0x4, fixed_abs, tag = 'smem constant byte address 0x4 - core index']
  #allocation1 [shape = 'u32[72,128]{1,0:T(1,128)}', space=vmem, size = 0x9000, scoped, tag = 'internal scratch']
  #allocation2 [shape = 'f32[1,1]{1,0:T(1,128)S(6)}', space=smem, size = 0x200, scoped, tag = 'scoped memory for tpu_custom_call.1']
  %s0 = inlined_call_operand.vmem [shape: f32[8,32], index: 0, kind: input, shape index: {}]
  %s1 = inlined_call_operand.vmem [shape: s32[1,8], index: 1, kind: input, shape index: {}]
  %s2 = inlined_call_operand.vmem [shape: s32[8,1], index: 2, kind: input, shape index: {}]
  %s3 = inlined_call_operand.<no memory space> [shape: f32[1,1], index: 3, kind: input, shape index: {}]
  %s4 = inlined_call_operand.hbm [shape: f32[1,1], index: 4, kind: output, shape index: {}]
  %s5 = sld [smem:[#allocation0]]
  $region26: #{tpu_custom_call.1} parent=0
    _
  %s7 = ssub.s32 1, %s5
  %s8 = scalar_select 0, %s7, %s5
  %9 = sst [smem:[#allocation2]] %s3
  $region1: #{tpu_custom_call.1} parent=0
    #allocation3 [shape = 'u8[512]{0}', space=vmem, size = 0x400, scoped, tag = 'output window, operand 0, single buffered']
    #allocation4 [shape = 's32[1]{0}', space=sflag, size = 0x4, scoped, tag = 'scoped memory for tpu_custom_call.1']
    %10 = vsyncpa [#allocation4], 0
    // Predicated region
    $region2: #{tpu_custom_call.1} parent=1 // pred_check
      _
    $region3: #{tpu_custom_call.1} parent=1 // pred_check_branch
      %12 = sbr.rel (0) target = $region5
    $region4: #{tpu_custom_call.1} parent=1 // pred_region
      _
    $region5: #{tpu_custom_call.1} parent=1 // pred_fallthru
      _
    // Predicated region
    $region6: #{tpu_custom_call.1} parent=1 // pred_check
      _
    $region7: #{tpu_custom_call.1} parent=1 // pred_check_branch
      %14 = sbr.rel (0) target = $region9
    $region8: #{tpu_custom_call.1} parent=1 // pred_region
      _
    $region9: #{tpu_custom_call.1} parent=1 // pred_fallthru
      _
    // Predicated region
    $region10: #{tpu_custom_call.1} parent=1 // pred_check
      _
    $region11: #{tpu_custom_call.1} parent=1 // pred_check_branch
      %16 = sbr.rel (0) target = $region13
    $region12: #{tpu_custom_call.1} parent=1 // pred_region
      _
    $region13: #{tpu_custom_call.1} parent=1 // pred_fallthru
      _
    // Predicated region
    $region14: #{tpu_custom_call.1} parent=1 // pred_check
      _
    $region15: #{tpu_custom_call.1} parent=1 // pred_check_branch
      %18 = sbr.rel (0) target = $region17
    $region16: #{tpu_custom_call.1} parent=1 // pred_region
      _
    $region17: #{tpu_custom_call.1} parent=1 // pred_fallthru
      _
    %v19 = vld [vmem:[%s0] sm:$0xff]
    %v20 = vld [vmem:[%s1] sm:$0x1]
    %v21 = vld [vmem:[%s2] sm:$0xff]
    %v22 = vlaneseq
    %v23 = vshrl.u32 %v22, 7
    %v24 = vadd.s32 %v23, 8
    %v25 = vadd.s32 %v23, 16
    %v26 = vadd.s32 %v23, 24
    %v27 = vadd.s32 %v23, 32
    %v28 = vadd.s32 %v23, 40
    %v29 = vadd.s32 %v23, 48
    %v30 = vadd.s32 %v23, 56
    %v31 = vadd.s32 %v23, 64
    %v32 = vadd.s32 %v23, 72
    %v33 = vadd.s32 %v23, 80
    %v34 = vadd.s32 %v23, 88
    %v35 = vadd.s32 %v23, 96
    %v36 = vadd.s32 %v23, 104
    %v37 = vadd.s32 %v23, 112
    %v38 = vadd.s32 %v23, 120
    %v39 = vperm.slane %v20, 0
    %vm40 = vcmp.eq.s32.totalorder %v23, %v39
    %vm41 = vcmp.eq.s32.totalorder %v24, %v39
    %vm42 = vcmp.eq.s32.totalorder %v25, %v39
    %vm43 = vcmp.eq.s32.totalorder %v26, %v39
    %vm44 = vcmp.eq.s32.totalorder %v27, %v39
    %vm45 = vcmp.eq.s32.totalorder %v28, %v39
    %vm46 = vcmp.eq.s32.totalorder %v29, %v39
    %vm47 = vcmp.eq.s32.totalorder %v30, %v39
    %vm48 = vcmp.eq.s32.totalorder %v31, %v39
    %vm49 = vcmp.eq.s32.totalorder %v32, %v39
    %vm50 = vcmp.eq.s32.totalorder %v33, %v39
    %vm51 = vcmp.eq.s32.totalorder %v34, %v39
    %vm52 = vcmp.eq.s32.totalorder %v35, %v39
    %vm53 = vcmp.eq.s32.totalorder %v36, %v39
    %vm54 = vcmp.eq.s32.totalorder %v37, %v39
    %vm55 = vcmp.eq.s32.totalorder %v38, %v39
    %v56 = vsel %vm40, 1, 0
    %v57 = vsel %vm41, 1, 0
    %v58 = vsel %vm42, 1, 0
    %v59 = vsel %vm43, 1, 0
    %v60 = vsel %vm44, 1, 0
    %v61 = vsel %vm45, 1, 0
    %v62 = vsel %vm46, 1, 0
    %v63 = vsel %vm47, 1, 0
    %v64 = vsel %vm48, 1, 0
    %v65 = vsel %vm49, 1, 0
    %v66 = vsel %vm50, 1, 0
    %v67 = vsel %vm51, 1, 0
    %v68 = vsel %vm52, 1, 0
    %v69 = vsel %vm53, 1, 0
    %v70 = vsel %vm54, 1, 0
    %v71 = vsel %vm55, 1, 0
    %v72 = vcvt.s32.f32 %v56
    %v73 = vcvt.s32.f32 %v57
    %v74 = vcvt.s32.f32 %v58
    %v75 = vcvt.s32.f32 %v59
    %v76 = vcvt.s32.f32 %v60
    %v77 = vcvt.s32.f32 %v61
    %v78 = vcvt.s32.f32 %v62
    %v79 = vcvt.s32.f32 %v63
    %v80 = vcvt.s32.f32 %v64
    %v81 = vcvt.s32.f32 %v65
    %v82 = vcvt.s32.f32 %v66
    %v83 = vcvt.s32.f32 %v67
    %v84 = vcvt.s32.f32 %v68
    %v85 = vcvt.s32.f32 %v69
    %v86 = vcvt.s32.f32 %v70
    %v87 = vcvt.s32.f32 %v71
    %vm88 = vcmask 64512
    %v90 = vsel %vm88, %v72, 0
    %v93 = vsel %vm88, %v73, 0
    %v96 = vsel %vm88, %v74, 0
    %v99 = vsel %vm88, %v75, 0
    %v102 = vsel %vm88, %v76, 0
    %v105 = vsel %vm88, %v77, 0
    %v108 = vsel %vm88, %v78, 0
    %v111 = vsel %vm88, %v79, 0
    %v114 = vsel %vm88, %v80, 0
    %v117 = vsel %vm88, %v81, 0
    %v120 = vsel %vm88, %v82, 0
    %v123 = vsel %vm88, %v83, 0
    %v126 = vsel %vm88, %v84, 0
    %v129 = vsel %vm88, %v85, 0
    %v132 = vsel %vm88, %v86, 0
    %v135 = vsel %vm88, %v87, 0
    %137 = vmatpush.msra.mxu0 0.0
    %138 = vmatpush.msra.mxu0 0.0
    %139 = vmatpush.msra.mxu0 0.0
    %140 = vmatpush.msra.mxu0 0.0
    %141 = vmatpush.msra.mxu0 0.0
    %142 = vmatpush.msra.mxu0 0.0
    %143 = vmatpush.msra.mxu0 0.0
    %144 = vmatpush.msra.mxu0 0.0
    %145 = vmatpush.msra.mxu0 0.0
    %146 = vmatpush.msra.mxu0 0.0
    %147 = vmatpush.msra.mxu0 0.0
    %148 = vmatpush.msra.mxu0 0.0
    %149 = vmatpush.msra.mxu0 0.0
    %150 = vmatpush.msra.mxu0 0.0
    %151 = vmatpush.msra.mxu0 0.0
    %152 = vmatpush.msra.mxu0 %v19
    %153 = vmatmul.f32.gmra.mxu0 %v90
    %v154 = vpop.f32.mrf.mxu0
    %v155 = vadd.f32 0.0, %v154
    %156 = vmatmul.f32.gmra.mxu0 %v93
    %v157 = vpop.f32.mrf.mxu0
    %v158 = vadd.f32 0.0, %v157
    %159 = vmatmul.f32.gmra.mxu0 %v96
    %v160 = vpop.f32.mrf.mxu0
    %v161 = vadd.f32 0.0, %v160
    %162 = vmatmul.f32.gmra.mxu0 %v99
    %v163 = vpop.f32.mrf.mxu0
    %v164 = vadd.f32 0.0, %v163
    %165 = vmatmul.f32.gmra.mxu0 %v102
    %v166 = vpop.f32.mrf.mxu0
    %v167 = vadd.f32 0.0, %v166
    %168 = vmatmul.f32.gmra.mxu0 %v105
    %v169 = vpop.f32.mrf.mxu0
    %v170 = vadd.f32 0.0, %v169
    %171 = vmatmul.f32.gmra.mxu0 %v108
    %v172 = vpop.f32.mrf.mxu0
    %v173 = vadd.f32 0.0, %v172
    %174 = vmatmul.f32.gmra.mxu0 %v111
    %v175 = vpop.f32.mrf.mxu0
    %v176 = vadd.f32 0.0, %v175
    %177 = vmatmul.f32.gmra.mxu0 %v114
    %v178 = vpop.f32.mrf.mxu0
    %v179 = vadd.f32 0.0, %v178
    %180 = vmatmul.f32.gmra.mxu0 %v117
    %v181 = vpop.f32.mrf.mxu0
    %v182 = vadd.f32 0.0, %v181
    %183 = vmatmul.f32.gmra.mxu0 %v120
    %v184 = vpop.f32.mrf.mxu0
    %v185 = vadd.f32 0.0, %v184
    %186 = vmatmul.f32.gmra.mxu0 %v123
    %v187 = vpop.f32.mrf.mxu0
    %v188 = vadd.f32 0.0, %v187
    %189 = vmatmul.f32.gmra.mxu0 %v126
    %v190 = vpop.f32.mrf.mxu0
    %v191 = vadd.f32 0.0, %v190
    %192 = vmatmul.f32.gmra.mxu0 %v129
    %v193 = vpop.f32.mrf.mxu0
    %v194 = vadd.f32 0.0, %v193
    %195 = vmatmul.f32.gmra.mxu0 %v132
    %v196 = vpop.f32.mrf.mxu0
    %v197 = vadd.f32 0.0, %v196
    %198 = vmatmul.f32.gmra.mxu0 %v135
    %v199 = vpop.f32.mrf.mxu0
    %v200 = vadd.f32 0.0, %v199
    %201 = vdwg.mxu0
    %v202 = vmul.f32 %v19, %v19
    %vm203 = vcmask 261120
    %v204 = vsel %vm203, %v202, 0.0
    %205 = vadd.xlane.f32.xlu0 %v204
    %v206 = vpop.xlane.xlu0 %205
    %v207 = vmax.f32 %v206, 1e-12
    %v208 = vrsqrt.pop %v207
    %v209 = vmul.f32 %v208, %v207
    %v210 = vmul.f32 %v209, %v208
    %v211 = vmul.f32 0.5, %v210
    %v212 = vsub.f32 1.5, %v211
    %v213 = vmul.f32 %v208, %v212
    %vm214 = vweird.f32 %v207
    %vm215 = vweird.f32 %v208
    %vm216 = vmor %vm214, %vm215
    %v217 = vsel %vm216, %v208, %v213
    %v218 = vmul.f32 %v19, %v217
    %v219 = vmul.f32 %v155, %v155
    %v220 = vmul.f32 %v158, %v158
    %v221 = vmul.f32 %v161, %v161
    %v222 = vmul.f32 %v164, %v164
    %v223 = vmul.f32 %v167, %v167
    %v224 = vmul.f32 %v170, %v170
    %v225 = vmul.f32 %v173, %v173
    %v226 = vmul.f32 %v176, %v176
    %v227 = vmul.f32 %v179, %v179
    %v228 = vmul.f32 %v182, %v182
    %v229 = vmul.f32 %v185, %v185
    %v230 = vmul.f32 %v188, %v188
    %v231 = vmul.f32 %v191, %v191
    %v232 = vmul.f32 %v194, %v194
    %v233 = vmul.f32 %v197, %v197
    %v234 = vmul.f32 %v200, %v200
    %v235 = vsel %vm203, %v219, 0.0
    %236 = vadd.xlane.f32.xlu0 %v235
    %v237 = vpop.xlane.xlu0 %236
    %v238 = vsel %vm203, %v220, 0.0
    %239 = vadd.xlane.f32.xlu0 %v238
    %v240 = vpop.xlane.xlu0 %239
    %v241 = vsel %vm203, %v221, 0.0
    %242 = vadd.xlane.f32.xlu0 %v241
    %v243 = vpop.xlane.xlu0 %242
    %v244 = vsel %vm203, %v222, 0.0
    %245 = vadd.xlane.f32.xlu0 %v244
    %v246 = vpop.xlane.xlu0 %245
    %v247 = vsel %vm203, %v223, 0.0
    %248 = vadd.xlane.f32.xlu0 %v247
    %v249 = vpop.xlane.xlu0 %248
    %v250 = vsel %vm203, %v224, 0.0
    %251 = vadd.xlane.f32.xlu0 %v250
    %v252 = vpop.xlane.xlu0 %251
    %v253 = vsel %vm203, %v225, 0.0
    %254 = vadd.xlane.f32.xlu0 %v253
    %v255 = vpop.xlane.xlu0 %254
    %v256 = vsel %vm203, %v226, 0.0
    %257 = vadd.xlane.f32.xlu0 %v256
    %v258 = vpop.xlane.xlu0 %257
    %v259 = vsel %vm203, %v227, 0.0
    %260 = vadd.xlane.f32.xlu0 %v259
    %v261 = vpop.xlane.xlu0 %260
    %v262 = vsel %vm203, %v228, 0.0
    %263 = vadd.xlane.f32.xlu0 %v262
    %v264 = vpop.xlane.xlu0 %263
    %v265 = vsel %vm203, %v229, 0.0
    %266 = vadd.xlane.f32.xlu0 %v265
    %v267 = vpop.xlane.xlu0 %266
    %v268 = vsel %vm203, %v230, 0.0
    %269 = vadd.xlane.f32.xlu0 %v268
    %v270 = vpop.xlane.xlu0 %269
    %v271 = vsel %vm203, %v231, 0.0
    %272 = vadd.xlane.f32.xlu0 %v271
    %v273 = vpop.xlane.xlu0 %272
    %v274 = vsel %vm203, %v232, 0.0
    %275 = vadd.xlane.f32.xlu0 %v274
    %v276 = vpop.xlane.xlu0 %275
    %v277 = vsel %vm203, %v233, 0.0
    %278 = vadd.xlane.f32.xlu0 %v277
    %v279 = vpop.xlane.xlu0 %278
    %v280 = vsel %vm203, %v234, 0.0
    %281 = vadd.xlane.f32.xlu0 %v280
    %v282 = vpop.xlane.xlu0 %281
    %v283 = vmax.f32 %v237, 1e-12
    %v284 = vmax.f32 %v240, 1e-12
    %v285 = vmax.f32 %v243, 1e-12
    %v286 = vmax.f32 %v246, 1e-12
    %v287 = vmax.f32 %v249, 1e-12
    %v288 = vmax.f32 %v252, 1e-12
    %v289 = vmax.f32 %v255, 1e-12
    %v290 = vmax.f32 %v258, 1e-12
    %v291 = vmax.f32 %v261, 1e-12
    %v292 = vmax.f32 %v264, 1e-12
    %v293 = vmax.f32 %v267, 1e-12
    %v294 = vmax.f32 %v270, 1e-12
    %v295 = vmax.f32 %v273, 1e-12
    %v296 = vmax.f32 %v276, 1e-12
    %v297 = vmax.f32 %v279, 1e-12
    %v298 = vmax.f32 %v282, 1e-12
    %v299 = vrsqrt.pop %v283
    %v300 = vmul.f32 %v299, %v283
    %v301 = vmul.f32 %v300, %v299
    %v302 = vmul.f32 0.5, %v301
    %v303 = vsub.f32 1.5, %v302
    %v304 = vmul.f32 %v299, %v303
    %vm305 = vweird.f32 %v283
    %vm306 = vweird.f32 %v299
    %vm307 = vmor %vm305, %vm306
    %v308 = vsel %vm307, %v299, %v304
    %v309 = vrsqrt.pop %v284
    %v310 = vmul.f32 %v309, %v284
    %v311 = vmul.f32 %v310, %v309
    %v312 = vmul.f32 0.5, %v311
    %v313 = vsub.f32 1.5, %v312
    %v314 = vmul.f32 %v309, %v313
    %vm315 = vweird.f32 %v284
    %vm316 = vweird.f32 %v309
    %vm317 = vmor %vm315, %vm316
    %v318 = vsel %vm317, %v309, %v314
    %v319 = vrsqrt.pop %v285
    %v320 = vmul.f32 %v319, %v285
    %v321 = vmul.f32 %v320, %v319
    %v322 = vmul.f32 0.5, %v321
    %v323 = vsub.f32 1.5, %v322
    %v324 = vmul.f32 %v319, %v323
    %vm325 = vweird.f32 %v285
    %vm326 = vweird.f32 %v319
    %vm327 = vmor %vm325, %vm326
    %v328 = vsel %vm327, %v319, %v324
    %v329 = vrsqrt.pop %v286
    %v330 = vmul.f32 %v329, %v286
    %v331 = vmul.f32 %v330, %v329
    %v332 = vmul.f32 0.5, %v331
    %v333 = vsub.f32 1.5, %v332
    %v334 = vmul.f32 %v329, %v333
    %vm335 = vweird.f32 %v286
    %vm336 = vweird.f32 %v329
    %vm337 = vmor %vm335, %vm336
    %v338 = vsel %vm337, %v329, %v334
    %v339 = vrsqrt.pop %v287
    %v340 = vmul.f32 %v339, %v287
    %v341 = vmul.f32 %v340, %v339
    %v342 = vmul.f32 0.5, %v341
    %v343 = vsub.f32 1.5, %v342
    %v344 = vmul.f32 %v339, %v343
    %vm345 = vweird.f32 %v287
    %vm346 = vweird.f32 %v339
    %vm347 = vmor %vm345, %vm346
    %v348 = vsel %vm347, %v339, %v344
    %v349 = vrsqrt.pop %v288
    %v350 = vmul.f32 %v349, %v288
    %v351 = vmul.f32 %v350, %v349
    %v352 = vmul.f32 0.5, %v351
    %v353 = vsub.f32 1.5, %v352
    %v354 = vmul.f32 %v349, %v353
    %vm355 = vweird.f32 %v288
    %vm356 = vweird.f32 %v349
    %vm357 = vmor %vm355, %vm356
    %v358 = vsel %vm357, %v349, %v354
    %v359 = vrsqrt.pop %v289
    %v360 = vmul.f32 %v359, %v289
    %v361 = vmul.f32 %v360, %v359
    %v362 = vmul.f32 0.5, %v361
    %v363 = vsub.f32 1.5, %v362
    %v364 = vmul.f32 %v359, %v363
    %vm365 = vweird.f32 %v289
    %vm366 = vweird.f32 %v359
    %vm367 = vmor %vm365, %vm366
    %v368 = vsel %vm367, %v359, %v364
    %v369 = vrsqrt.pop %v290
    %v370 = vmul.f32 %v369, %v290
    %v371 = vmul.f32 %v370, %v369
    %v372 = vmul.f32 0.5, %v371
    %v373 = vsub.f32 1.5, %v372
    %v374 = vmul.f32 %v369, %v373
    %vm375 = vweird.f32 %v290
    %vm376 = vweird.f32 %v369
    %vm377 = vmor %vm375, %vm376
    %v378 = vsel %vm377, %v369, %v374
    %v379 = vrsqrt.pop %v291
    %v380 = vmul.f32 %v379, %v291
    %v381 = vmul.f32 %v380, %v379
    %v382 = vmul.f32 0.5, %v381
    %v383 = vsub.f32 1.5, %v382
    %v384 = vmul.f32 %v379, %v383
    %vm385 = vweird.f32 %v291
    %vm386 = vweird.f32 %v379
    %vm387 = vmor %vm385, %vm386
    %v388 = vsel %vm387, %v379, %v384
    %v389 = vrsqrt.pop %v292
    %v390 = vmul.f32 %v389, %v292
    %v391 = vmul.f32 %v390, %v389
    %v392 = vmul.f32 0.5, %v391
    %v393 = vsub.f32 1.5, %v392
    %v394 = vmul.f32 %v389, %v393
    %vm395 = vweird.f32 %v292
    %vm396 = vweird.f32 %v389
    %vm397 = vmor %vm395, %vm396
    %v398 = vsel %vm397, %v389, %v394
    %v399 = vrsqrt.pop %v293
    %v400 = vmul.f32 %v399, %v293
    %v401 = vmul.f32 %v400, %v399
    %v402 = vmul.f32 0.5, %v401
    %v403 = vsub.f32 1.5, %v402
    %v404 = vmul.f32 %v399, %v403
    %vm405 = vweird.f32 %v293
    %vm406 = vweird.f32 %v399
    %vm407 = vmor %vm405, %vm406
    %v408 = vsel %vm407, %v399, %v404
    %v409 = vrsqrt.pop %v294
    %v410 = vmul.f32 %v409, %v294
    %v411 = vmul.f32 %v410, %v409
    %v412 = vmul.f32 0.5, %v411
    %v413 = vsub.f32 1.5, %v412
    %v414 = vmul.f32 %v409, %v413
    %vm415 = vweird.f32 %v294
    %vm416 = vweird.f32 %v409
    %vm417 = vmor %vm415, %vm416
    %v418 = vsel %vm417, %v409, %v414
    %v419 = vrsqrt.pop %v295
    %v420 = vmul.f32 %v419, %v295
    %v421 = vmul.f32 %v420, %v419
    %v422 = vmul.f32 0.5, %v421
    %v423 = vsub.f32 1.5, %v422
    %v424 = vmul.f32 %v419, %v423
    %vm425 = vweird.f32 %v295
    %vm426 = vweird.f32 %v419
    %vm427 = vmor %vm425, %vm426
    %v428 = vsel %vm427, %v419, %v424
    %v429 = vrsqrt.pop %v296
    %v430 = vmul.f32 %v429, %v296
    %v431 = vmul.f32 %v430, %v429
    %v432 = vmul.f32 0.5, %v431
    %v433 = vsub.f32 1.5, %v432
    %v434 = vmul.f32 %v429, %v433
    %vm435 = vweird.f32 %v296
    %vm436 = vweird.f32 %v429
    %vm437 = vmor %vm435, %vm436
    %v438 = vsel %vm437, %v429, %v434
    %v439 = vrsqrt.pop %v297
    %v440 = vmul.f32 %v439, %v297
    %v441 = vmul.f32 %v440, %v439
    %v442 = vmul.f32 0.5, %v441
    %v443 = vsub.f32 1.5, %v442
    %v444 = vmul.f32 %v439, %v443
    %vm445 = vweird.f32 %v297
    %vm446 = vweird.f32 %v439
    %vm447 = vmor %vm445, %vm446
    %v448 = vsel %vm447, %v439, %v444
    %v449 = vrsqrt.pop %v298
    %v450 = vmul.f32 %v449, %v298
    %v451 = vmul.f32 %v450, %v449
    %v452 = vmul.f32 0.5, %v451
    %v453 = vsub.f32 1.5, %v452
    %v454 = vmul.f32 %v449, %v453
    %vm455 = vweird.f32 %v298
    %vm456 = vweird.f32 %v449
    %vm457 = vmor %vm455, %vm456
    %v458 = vsel %vm457, %v449, %v454
    %v459 = vmul.f32 %v155, %v308
    %v460 = vmul.f32 %v158, %v318
    %v461 = vmul.f32 %v161, %v328
    %v462 = vmul.f32 %v164, %v338
    %v463 = vmul.f32 %v167, %v348
    %v464 = vmul.f32 %v170, %v358
    %v465 = vmul.f32 %v173, %v368
    %v466 = vmul.f32 %v176, %v378
    %v467 = vmul.f32 %v179, %v388
    %v468 = vmul.f32 %v182, %v398
    %v469 = vmul.f32 %v185, %v408
    %v470 = vmul.f32 %v188, %v418
    %v471 = vmul.f32 %v191, %v428
    %v472 = vmul.f32 %v194, %v438
    %v473 = vmul.f32 %v197, %v448
    %v474 = vmul.f32 %v200, %v458
    %s475 = sld [smem:[#allocation2]]
    %v476 = vstv %s475
    %v477 = vmul.f32 %v476, 1.442695
    %v478 = vpow.pop %v477
    %v480 = vsel %vm203, %v218, 0
    %v483 = vsel %vm203, %v459, 0
    %v486 = vsel %vm203, %v460, 0
    %v489 = vsel %vm203, %v461, 0
    %v492 = vsel %vm203, %v462, 0
    %v495 = vsel %vm203, %v463, 0
    %v498 = vsel %vm203, %v464, 0
    %v501 = vsel %vm203, %v465, 0
    %v504 = vsel %vm203, %v466, 0
    %v507 = vsel %vm203, %v467, 0
    %v510 = vsel %vm203, %v468, 0
    %v513 = vsel %vm203, %v469, 0
    %v516 = vsel %vm203, %v470, 0
    %v519 = vsel %vm203, %v471, 0
    %v522 = vsel %vm203, %v472, 0
    %v525 = vsel %vm203, %v473, 0
    %v528 = vsel %vm203, %v474, 0
    %530 = vmatpush.xpose.msra.mxu0 %v528
    %531 = vmatpush.xpose.msra.mxu0 %v525
    %532 = vmatpush.xpose.msra.mxu0 %v522
    %533 = vmatpush.xpose.msra.mxu0 %v519
    %534 = vmatpush.xpose.msra.mxu0 %v516
    %535 = vmatpush.xpose.msra.mxu0 %v513
    %536 = vmatpush.xpose.msra.mxu0 %v510
    %537 = vmatpush.xpose.msra.mxu0 %v507
    %538 = vmatpush.xpose.msra.mxu0 %v504
    %539 = vmatpush.xpose.msra.mxu0 %v501
    %540 = vmatpush.xpose.msra.mxu0 %v498
    %541 = vmatpush.xpose.msra.mxu0 %v495
    %542 = vmatpush.xpose.msra.mxu0 %v492
    %543 = vmatpush.xpose.msra.mxu0 %v489
    %544 = vmatpush.xpose.msra.mxu0 %v486
    %545 = vmatpush.xpose.msra.mxu0 %v483
    %546 = vmatmul.f32.gmra.mxu0 %v480
    %v547 = vpop.f32.mrf.mxu0
    %v548 = vadd.f32 0.0, %v547
    %549 = vdwg.mxu0
    %v550 = vmul.f32 %v548, %v478
    %v551 = vlaneseq
    %v552 = vand.u32 %v551, 127
    %vm553 = vcmp.lt.s32.totalorder %v552, 110
    %v554 = vsel %vm553, %v550, -1e+30
    %555 = vset.pattern.permute.xlu0 0
    %556 = vperm.xlu0 %555, %v21
    %v557 = vpop.permute.xlu0 %556
    %vm558 = vcmp.eq.s32.totalorder %v552, %v557
    %v559 = vsel %vm558, 1, 0
    %v560 = vcvt.s32.f32 %v559
    %vm561 = vcmp.ge.s32.totalorder %v21, 0
    %v562 = vsel %vm561, 1, 0
    %v563 = vcvt.s32.f32 %v562
    %564 = vmax.xlane.f32.xlu0 %v554
    %v565 = vpop.xlane.xlu0 %564
    %v566 = vsub.f32 %v554, %v565
    %v567 = vmul.f32 %v566, 1.442695
    %v568 = vpow.pop %v567
    %569 = vadd.xlane.f32.xlu0 %v568
    %v570 = vpop.xlane.xlu0 %569
    %v571 = vlog2.pop %v570
    %v572 = vmul.f32 %v571, 0.6931472
    %v573 = vadd.f32 %v572, %v565
    %v574 = vmul.f32 %v554, %v560
    %575 = vadd.xlane.f32.xlu0 %v574
    %v576 = vpop.xlane.xlu0 %575
    %v577 = vsub.f32 %v573, %v576
    %v578 = vmul.f32 %v577, %v563
    %vm579 = vcmask 7168
    %v580 = vsel %vm579, %v563, 0.0
    %v581 = vrot.slane %v580, 4
    %v582 = vadd.f32 %v580, %v581
    %v583 = vrot.slane %v582, 2
    %v584 = vadd.f32 %v582, %v583
    %v585 = vrot.slane %v584, 1
    %v586 = vadd.f32 %v584, %v585
    %v587 = vmax.f32 %v586, 1.0
    %v588 = vsel %vm579, %v578, 0.0
    %v589 = vrot.slane %v588, 4
    %v590 = vadd.f32 %v588, %v589
    %v591 = vrot.slane %v590, 2
    %v592 = vadd.f32 %v590, %v591
    %v593 = vrot.slane %v592, 1
    %v594 = vadd.f32 %v592, %v593
    %v595 = vrcp.pop %v587
    %v596 = vmul.f32 %v587, %v595
    %v597 = vsub.f32 1.0, %v596
    %v598 = vmul.f32 %v595, %v597
    %v599 = vadd.f32 %v595, %v598
    %vm600 = vweird.f32 %v587
    %vm601 = vweird.f32 %v595
    %vm602 = vmor %vm600, %vm601
    %v603 = vsel %vm602, %v595, %v599
    %v604 = vand.u32 2147483647, %v587
    %vm605 = vcmp.eq.f32.partialorder %v604, 8.507059e+37
    %v606 = vand.u32 %v587, 2147483648
    %v607 = vor.u32 1.1754944e-38, %v606
    %v608 = vsel %vm605, %v607, %v603
    %v609 = vmul.f32 %v594, %v608
    %vm610 = vcmask 0
    %611 = vst.msk [vmem:[#allocation3] sm:$0x1] %vm610, %v609
    // Predicated region
    $region18: #{tpu_custom_call.1} parent=1 // pred_check
      _
    $region19: #{tpu_custom_call.1} parent=1 // pred_check_branch
      %613 = sbr.rel (0) target = $region21
    $region20: #{tpu_custom_call.1} parent=1 // pred_region
      %615 = vsyncadd [#allocation4], 0
      %s617 = sshll.u32 [#allocation3], 4
      %s618 = int_to_ptr.vmem [resolvable:$true] %s617
      %s619 = sshll.u32 %s4, 4
      %s620 = int_to_ptr.hbm [resolvable:$true] %s619
      %622 = dma.vmem_to_hbm [thread:$0]  %s618, 16, %s620, [#allocation4]
    $region21: #{tpu_custom_call.1} parent=1 // pred_fallthru
      _
    // Predicated region
    $region22: #{tpu_custom_call.1} parent=1 // pred_check
      _
    $region23: #{tpu_custom_call.1} parent=1 // pred_check_branch
      %624 = sbr.rel (0) target = $region25
    $region24: #{tpu_custom_call.1} parent=1 // pred_region
      %626 = dma.done [#allocation4], 16
    $region25: #{tpu_custom_call.1} parent=1 // pred_fallthru
      _
    %627 = vsyncpa [#allocation4], 1

</llo_original>
